<compile_context>
chip_gen: v7x
topology: tpu7x:2x2x1
jax: 0.10.0
libtpu: 0.0.40
codegen_flags: <defaults>
</compile_context>

<pallas_src>
import jax
import jax.numpy as jnp
from jax.experimental import pallas as pl
from jax.experimental.pallas import tpu as pltpu

SEQ_LENGTH = 17          # seq_length in the reference script
LAMBDA_PHYS = 0.1        # PhysicsLoss default


def _physics_loss_kernel(scal_ref, packed_ref, out_ref):
    # scal_ref   : SMEM f32[4]  = [mean(alpha), mean(alpha^2), lambda_phys, 1/B]
    # packed_ref : VMEM f32[5, block]; rows = y_pred, y_true, Q_s, Q_F, Q_d
    # out_ref    : VMEM f32[1, 1]; same block for every grid step -> accumulator
    @pl.when(pl.program_id(0) == 0)
    def _():
        out_ref[...] = jnp.zeros_like(out_ref)

    y_pred = packed_ref[0:1, :]          # (1, block)
    y_true = packed_ref[1:2, :]
    q_s = packed_ref[2:3, :]
    q_f = packed_ref[3:4, :]
    q_d = packed_ref[4:5, :]

    v = q_s + q_f - q_d                  # converted_VS
    d = y_pred - y_true

    s_dd = jnp.sum(d * d)                # sum_b (y - t)^2
    s_yy = jnp.sum(y_pred * y_pred)      # sum_b y^2
    s_yv = jnp.sum(y_pred * v)           # sum_b y*v
    s_vv = jnp.sum(v * v)                # sum_b v^2

    alpha_mean = scal_ref[0]
    alpha_sq_mean = scal_ref[1]
    lam = scal_ref[2]
    inv_b = scal_ref[3]

    partial = inv_b * (
        s_dd + lam * (s_yy - 2.0 * alpha_mean * s_yv + alpha_sq_mean * s_vv))
    out_ref[...] += jnp.reshape(partial, (1, 1))


def physics_loss(y_pred, y_true, q_s, q_f, q_d, alpha,
                 lambda_phys=LAMBDA_PHYS, block_lanes=8192):
    """Pallas wrapper. y_*, Q_* are (B, 1); alpha is (S,). Returns scalar loss."""
    b = y_pred.shape[0]

    def flat(x):
        return x.astype(jnp.float32).reshape(-1)

    # One lane-dense packed array: (5, B), zero-padded along lanes.
    stacked = jnp.stack(
        [flat(y_pred), flat(y_true), flat(q_s), flat(q_f), flat(q_d)], axis=0)

    bp0 = int(pl.cdiv(b, 128)) * 128
    block = min(int(block_lanes), bp0)          # multiple of 128
    bp = int(pl.cdiv(bp0, block)) * block       # multiple of `block`
    packed = jnp.pad(stacked, ((0, 0), (0, bp - b)))

    # alpha only enters via two moments -> tiny SMEM scalar table, no VMEM tile.
    af = alpha.astype(jnp.float32).reshape(-1)
    scal = jnp.stack([
        jnp.mean(af),
        jnp.mean(af * af),
        jnp.float32(lambda_phys),
        jnp.float32(1.0 / b),
    ]).astype(jnp.float32)

    out = pl.pallas_call(
        _physics_loss_kernel,
        out_shape=jax.ShapeDtypeStruct((1, 1), jnp.float32),
        grid_spec=pltpu.PrefetchScalarGridSpec(
            num_scalar_prefetch=0,
            grid=(bp // block,),
            in_specs=[
                pl.BlockSpec(memory_space=pltpu.MemorySpace.SMEM),
                pl.BlockSpec((5, block), lambda k: (0, k)),
            ],
            out_specs=pl.BlockSpec((1, 1), lambda k: (0, 0)),
        ),
        compiler_params=pltpu.CompilerParams(
            dimension_semantics=("arbitrary",)),
    )(scal, packed)
    return out[0, 0]


def physics_loss_ref(y_pred, y_true, q_s, q_f, q_d, alpha,
                     lambda_phys=LAMBDA_PHYS):
    mse = jnp.mean((y_pred - y_true) ** 2)
    converted_vs = q_s + q_f - q_d
    constraint = jnp.mean((y_pred - alpha.reshape(1, -1) * converted_vs) ** 2)
    return mse + lambda_phys * constraint


if __name__ == "__main__":
    B = 8  # small batch

    key = jax.random.PRNGKey(0)
    k1, k2, k3, k4, k5 = jax.random.split(key, 5)
    y_pred = jax.random.normal(k1, (B, 1), dtype=jnp.float32)
    y_true = jax.random.normal(k2, (B, 1), dtype=jnp.float32)
    q_s = jax.random.normal(k3, (B, 1), dtype=jnp.float32)
    q_f = jax.random.normal(k4, (B, 1), dtype=jnp.float32)
    q_d = jax.random.normal(k5, (B, 1), dtype=jnp.float32)

    # Deterministic parameter init, exactly as in LSTMModel.__init__:
    # self.alpha = nn.Parameter(torch.ones(seq_length))
    alpha = jnp.ones((SEQ_LENGTH,), dtype=jnp.float32)

    loss = physics_loss(y_pred, y_true, q_s, q_f, q_d, alpha)
    loss = jax.block_until_ready(loss)

    ref = physics_loss_ref(y_pred, y_true, q_s, q_f, q_d, alpha)
    assert jnp.allclose(loss, ref, rtol=1e-5, atol=1e-6), (loss, ref)

    print("KERNEL_OK")
</pallas_src>

<mosaic_0001>
module attributes {stable_mosaic.version = 11 : i64} {
  func.func @_physics_loss_kernel(%arg0: i32, %arg1: memref<4xf32, #tpu.memory_space<smem>>, %arg2: memref<5x128xf32, #tpu.memory_space<vmem>>, %arg3: memref<1x1xf32, #tpu.memory_space<vmem>>) attributes {dimension_semantics = [#tpu.dimension_semantics<arbitrary>], iteration_bounds = array<i64: 1>, scalar_prefetch = 0 : i64, scratch_operands = 0 : i64, tpu.core_type = #tpu.core_type<tc>, window_params = [{transform_indices = @transform_0, window_bounds = array<i64: 4>}, {transform_indices = @transform_1, window_bounds = array<i64: 5, 128>}, {pipeline_mode = #tpu.pipeline_mode<synchronous>, transform_indices = @transform_2, window_bounds = array<i64: 1, 1>}]} {
    %c0_i32 = arith.constant 0 : i32
    %0 = arith.cmpi eq, %arg0, %c0_i32 : i32
    %1 = arith.extui %0 : i1 to i32
    %c0_i32_0 = arith.constant 0 : i32
    %2 = arith.cmpi ne, %1, %c0_i32_0 : i32
    scf.if %2 {
      %cst_18 = arith.constant 0.000000e+00 : f32
      %47 = vector.broadcast %cst_18 : f32 to vector<1x1xf32>
      %c0_19 = arith.constant 0 : index
      %c0_20 = arith.constant 0 : index
      %48 = vector.load %arg3[%c0_19, %c0_20] : memref<1x1xf32, #tpu.memory_space<vmem>>, vector<1x1xf32>
      tpu.vector_store %arg3[%c0_19, %c0_20], %47 {strides = array<i32>} : memref<1x1xf32, #tpu.memory_space<vmem>>, vector<1x1xf32>,
    } else {
    }
    %c0 = arith.constant 0 : index
    %c0_1 = arith.constant 0 : index
    %3 = vector.load %arg2[%c0, %c0_1] : memref<5x128xf32, #tpu.memory_space<vmem>>, vector<1x128xf32>
    %c1 = arith.constant 1 : index
    %c0_2 = arith.constant 0 : index
    %4 = vector.load %arg2[%c1, %c0_2] : memref<5x128xf32, #tpu.memory_space<vmem>>, vector<1x128xf32>
    %c2 = arith.constant 2 : index
    %c0_3 = arith.constant 0 : index
    %5 = vector.load %arg2[%c2, %c0_3] : memref<5x128xf32, #tpu.memory_space<vmem>>, vector<1x128xf32>
    %c3 = arith.constant 3 : index
    %c0_4 = arith.constant 0 : index
    %6 = vector.load %arg2[%c3, %c0_4] : memref<5x128xf32, #tpu.memory_space<vmem>>, vector<1x128xf32>
    %c4 = arith.constant 4 : index
    %c0_5 = arith.constant 0 : index
    %7 = vector.load %arg2[%c4, %c0_5] : memref<5x128xf32, #tpu.memory_space<vmem>>, vector<1x128xf32>
    %8 = arith.addf %5, %6 : vector<1x128xf32>
    %9 = arith.subf %8, %7 : vector<1x128xf32>
    %10 = arith.subf %3, %4 : vector<1x128xf32>
    %11 = arith.mulf %10, %10 : vector<1x128xf32>
    %12 = vector.shape_cast %11 : vector<1x128xf32> to vector<1x1x128xf32>
    %cst = arith.constant dense<0.000000e+00> : vector<1xf32>
    %13 = vector.multi_reduction <add>, %12, %cst [1, 2] : vector<1x1x128xf32> to vector<1xf32>
    %14 = vector.shape_cast %13 : vector<1xf32> to vector<1x1x1xf32>
    %15 = vector.extract %14[0, 0, 0] : f32 from vector<1x1x1xf32>
    %16 = arith.mulf %3, %3 : vector<1x128xf32>
    %17 = vector.shape_cast %16 : vector<1x128xf32> to vector<1x1x128xf32>
    %cst_6 = arith.constant dense<0.000000e+00> : vector<1xf32>
    %18 = vector.multi_reduction <add>, %17, %cst_6 [1, 2] : vector<1x1x128xf32> to vector<1xf32>
    %19 = vector.shape_cast %18 : vector<1xf32> to vector<1x1x1xf32>
    %20 = vector.extract %19[0, 0, 0] : f32 from vector<1x1x1xf32>
    %21 = arith.mulf %3, %9 : vector<1x128xf32>
    %22 = vector.shape_cast %21 : vector<1x128xf32> to vector<1x1x128xf32>
    %cst_7 = arith.constant dense<0.000000e+00> : vector<1xf32>
    %23 = vector.multi_reduction <add>, %22, %cst_7 [1, 2] : vector<1x1x128xf32> to vector<1xf32>
    %24 = vector.shape_cast %23 : vector<1xf32> to vector<1x1x1xf32>
    %25 = vector.extract %24[0, 0, 0] : f32 from vector<1x1x1xf32>
    %26 = arith.mulf %9, %9 : vector<1x128xf32>
    %27 = vector.shape_cast %26 : vector<1x128xf32> to vector<1x1x128xf32>
    %cst_8 = arith.constant dense<0.000000e+00> : vector<1xf32>
    %28 = vector.multi_reduction <add>, %27, %cst_8 [1, 2] : vector<1x1x128xf32> to vector<1xf32>
    %29 = vector.shape_cast %28 : vector<1xf32> to vector<1x1x1xf32>
    %30 = vector.extract %29[0, 0, 0] : f32 from vector<1x1x1xf32>
    %c0_9 = arith.constant 0 : index
    %31 = memref.load %arg1[%c0_9] : memref<4xf32, #tpu.memory_space<smem>>
    %c1_10 = arith.constant 1 : index
    %32 = memref.load %arg1[%c1_10] : memref<4xf32, #tpu.memory_space<smem>>
    %c2_11 = arith.constant 2 : index
    %33 = memref.load %arg1[%c2_11] : memref<4xf32, #tpu.memory_space<smem>>
    %c3_12 = arith.constant 3 : index
    %34 = memref.load %arg1[%c3_12] : memref<4xf32, #tpu.memory_space<smem>>
    %cst_13 = arith.constant 2.000000e+00 : f32
    %35 = arith.mulf %cst_13, %31 : f32
    %36 = arith.mulf %35, %25 : f32
    %37 = arith.subf %20, %36 : f32
    %38 = arith.mulf %32, %30 : f32
    %39 = arith.addf %37, %38 : f32
    %40 = arith.mulf %33, %39 : f32
    %41 = arith.addf %15, %40 : f32
    %42 = arith.mulf %34, %41 : f32
    %c0_14 = arith.constant 0 : index
    %c0_15 = arith.constant 0 : index
    %43 = vector.load %arg3[%c0_14, %c0_15] : memref<1x1xf32, #tpu.memory_space<vmem>>, vector<1x1xf32>
    %44 = vector.broadcast %42 : f32 to vector<1x1xf32>
    %45 = arith.addf %43, %44 : vector<1x1xf32>
    %c0_16 = arith.constant 0 : index
    %c0_17 = arith.constant 0 : index
    %46 = vector.load %arg3[%c0_16, %c0_17] : memref<1x1xf32, #tpu.memory_space<vmem>>, vector<1x1xf32>
    tpu.vector_store %arg3[%c0_16, %c0_17], %45 {strides = array<i32>} : memref<1x1xf32, #tpu.memory_space<vmem>>, vector<1x1xf32>,
    return
  }
  func.func @transform_0(%arg0: i32) -> i32 {
    %c0_i32 = arith.constant 0 : i32
    %c0_i32_0 = arith.constant 0 : i32
    return %c0_i32 : i32
  }
  func.func @transform_1(%arg0: i32) -> (i32, i32) {
    %c0_i32 = arith.constant 0 : i32
    %c0_i32_0 = arith.constant 0 : i32
    return %c0_i32, %arg0 : i32, i32
  }
  func.func @transform_2(%arg0: i32) -> (i32, i32) {
    %c0_i32 = arith.constant 0 : i32
    %c0_i32_0 = arith.constant 0 : i32
    %c0_i32_1 = arith.constant 0 : i32
    return %c0_i32, %c0_i32_0 : i32, i32
  }
}

</mosaic_0001>

<llo_original>
// kernel: tpu_custom_call.1
$region0: #{tpu_custom_call.1}
  #allocation0 [shape = 'u32[]', space=smem, size = 0x4, offset = 0x4, fixed_abs, tag = 'smem constant byte address 0x4 - core index']
  #allocation1 [shape = 'u32[144,128]{1,0:T(1,128)}', space=vmem, size = 0x12000, scoped, tag = 'internal scratch']
  %s0 = inlined_call_operand.hbm [shape: f32[4], index: 0, kind: input, shape index: {}]
  %s1 = inlined_call_operand.hbm [shape: f32[5,128], index: 1, kind: input, shape index: {}]
  %s2 = inlined_call_operand.hbm [shape: f32[1,1], index: 2, kind: output, shape index: {}]
  %s3 = sld [smem:[#allocation0]]
  $region30: #{tpu_custom_call.1} parent=0
    _
  %s5 = ssub.s32 1, %s3
  %s6 = scalar_select 0, %s5, %s3
  $region1: #{tpu_custom_call.1} parent=0
    #allocation2 [shape = 'u8[512]{0}', space=smem, size = 0x200, scoped, tag = 'input window, operand 0, single buffered']
    #allocation3 [shape = 's32[1]{0}', space=sflag, size = 0x4, scoped, tag = 'scoped memory for tpu_custom_call.1']
    #allocation4 [shape = 's32[1]{0}', space=sflag, size = 0x4, scoped, tag = 'scoped memory for tpu_custom_call.1']
    #allocation5 [shape = 's32[1]{0}', space=sflag, size = 0x4, scoped, tag = 'scoped memory for tpu_custom_call.1']
    #allocation6 [shape = 'u8[4096]{0}', space=vmem, size = 0x1000, scoped, tag = 'input window, operand 1, single buffered']
    #allocation7 [shape = 'u8[512]{0}', space=vmem, size = 0x400, scoped, tag = 'output window, operand 0, single buffered']
    %7 = vsyncpa [#allocation5], 0
    %8 = vsyncpa [#allocation3], 0
    %9 = vsyncpa [#allocation4], 0
    // Predicated region
    $region2: #{tpu_custom_call.1} parent=1 // pred_check
      _
    $region3: #{tpu_custom_call.1} parent=1 // pred_check_branch
      %11 = sbr.rel (0) target = $region5
    $region4: #{tpu_custom_call.1} parent=1 // pred_region
      %s13 = ssub.s32 16, 16
      %14 = vsyncadd [#allocation5], %s13
      %17 = dma.hbm_to_smem %s0, 16, [#allocation2], [#allocation5]
    $region5: #{tpu_custom_call.1} parent=1 // pred_fallthru
      _
    // Predicated region
    $region6: #{tpu_custom_call.1} parent=1 // pred_check
      _
    $region7: #{tpu_custom_call.1} parent=1 // pred_check_branch
      %19 = sbr.rel (0) target = $region9
    $region8: #{tpu_custom_call.1} parent=1 // pred_region
      %s21 = ssub.s32 128, 128
      %22 = vsyncadd [#allocation3], %s21
      %s24 = sshll.u32 [#allocation6], 4
      %s25 = int_to_ptr.vmem [resolvable:$true] %s24
      %27 = dma.hbm_to_vmem [thread:$0]  %s1, 128, %s25, [#allocation3]
    $region9: #{tpu_custom_call.1} parent=1 // pred_fallthru
      _
    // Predicated region
    $region10: #{tpu_custom_call.1} parent=1 // pred_check
      _
    $region11: #{tpu_custom_call.1} parent=1 // pred_check_branch
      %29 = sbr.rel (0) target = $region13
    $region12: #{tpu_custom_call.1} parent=1 // pred_region
      %30 = dma.done [#allocation5], 16
    $region13: #{tpu_custom_call.1} parent=1 // pred_fallthru
      _
    // Predicated region
    $region14: #{tpu_custom_call.1} parent=1 // pred_check
      _
    $region15: #{tpu_custom_call.1} parent=1 // pred_check_branch
      %32 = sbr.rel (0) target = $region17
    $region16: #{tpu_custom_call.1} parent=1 // pred_region
      %33 = dma.done [#allocation3], 128
    $region17: #{tpu_custom_call.1} parent=1 // pred_fallthru
      _
    %34 = sfence
    %p35 = scmp.eq.s32.totalorder 0, 0
    // Predicated region
    $region18: #{tpu_custom_call.1} parent=1 // pred_check
      %p36 = pneg %p35
    $region19: #{tpu_custom_call.1} parent=1 // pred_check_branch
      %38 = sbr.rel (%p36) target = $region21
    $region20: #{tpu_custom_call.1} parent=1 // pred_region
      %vm39 = vcmask 0
      %40 = vst.msk [vmem:[#allocation7] sm:$0x1] %vm39, 0.0
    $region21: #{tpu_custom_call.1} parent=1 // pred_fallthru
      _
    %v41 = vld [vmem:[#allocation6] sm:$0x1]
    %v42 = vld [vmem:[#allocation6 + $0x1] sm:$0x1]
    %v43 = vld [vmem:[#allocation6 + $0x2] sm:$0x1]
    %v44 = vld [vmem:[#allocation6 + $0x3] sm:$0x1]
    %v45 = vld [vmem:[#allocation6 + $0x4] sm:$0x1]
    %v46 = vadd.f32 %v43, %v44
    %v47 = vsub.f32 %v46, %v45
    %v48 = vsub.f32 %v41, %v42
    %v49 = vmul.f32 %v48, %v48
    %vm50 = vcmask 1040384
    %v51 = vsel %vm50, %v49, 0.0
    %52 = vadd.xlane.f32.xlu0 %v51
    %v53 = vpop.xlane.xlu0 %52
    %v54 = vrot.slane %v53, 4
    %v55 = vadd.f32 %v53, %v54
    %v56 = vrot.slane %v55, 2
    %v57 = vadd.f32 %v55, %v56
    %v58 = vrot.slane %v57, 1
    %v59 = vadd.f32 %v57, %v58
    %s60 = vtos %v59
    %v61 = vmul.f32 %v41, %v41
    %v62 = vsel %vm50, %v61, 0.0
    %63 = vadd.xlane.f32.xlu0 %v62
    %v64 = vpop.xlane.xlu0 %63
    %v65 = vrot.slane %v64, 4
    %v66 = vadd.f32 %v64, %v65
    %v67 = vrot.slane %v66, 2
    %v68 = vadd.f32 %v66, %v67
    %v69 = vrot.slane %v68, 1
    %v70 = vadd.f32 %v68, %v69
    %s71 = vtos %v70
    %v72 = vmul.f32 %v41, %v47
    %v73 = vsel %vm50, %v72, 0.0
    %74 = vadd.xlane.f32.xlu0 %v73
    %v75 = vpop.xlane.xlu0 %74
    %v76 = vrot.slane %v75, 4
    %v77 = vadd.f32 %v75, %v76
    %v78 = vrot.slane %v77, 2
    %v79 = vadd.f32 %v77, %v78
    %v80 = vrot.slane %v79, 1
    %v81 = vadd.f32 %v79, %v80
    %s82 = vtos %v81
    %v83 = vmul.f32 %v47, %v47
    %v84 = vsel %vm50, %v83, 0.0
    %85 = vadd.xlane.f32.xlu0 %v84
    %v86 = vpop.xlane.xlu0 %85
    %v87 = vrot.slane %v86, 4
    %v88 = vadd.f32 %v86, %v87
    %v89 = vrot.slane %v88, 2
    %v90 = vadd.f32 %v88, %v89
    %v91 = vrot.slane %v90, 1
    %v92 = vadd.f32 %v90, %v91
    %s93 = vtos %v92
    %s94 = sld [smem:[#allocation2]]
    %s95 = sld [smem:[#allocation2 + $0x1]]
    %s96 = sld [smem:[#allocation2 + $0x2]]
    %s97 = sld [smem:[#allocation2 + $0x3]]
    %s98 = smul.f32 %s94, 2.0
    %s99 = smul.f32 %s98, %s82
    %s100 = ssub.f32 %s71, %s99
    %s101 = smul.f32 %s95, %s93
    %s102 = sadd.f32 %s100, %s101
    %s103 = smul.f32 %s96, %s102
    %s104 = sadd.f32 %s60, %s103
    %s105 = smul.f32 %s97, %s104
    %v106 = vld [vmem:[#allocation7] sm:$0x1]
    %v107 = vstv %s105
    %v108 = vadd.f32 %v106, %v107
    %vm109 = vcmask 0
    %110 = vst.msk [vmem:[#allocation7] sm:$0x1] %vm109, %v108
    // Predicated region
    $region22: #{tpu_custom_call.1} parent=1 // pred_check
      _
    $region23: #{tpu_custom_call.1} parent=1 // pred_check_branch
      %112 = sbr.rel (0) target = $region25
    $region24: #{tpu_custom_call.1} parent=1 // pred_region
      %s114 = ssub.s32 16, 16
      %115 = vsyncadd [#allocation4], %s114
      %s117 = sshll.u32 [#allocation7], 4
      %s118 = int_to_ptr.vmem [resolvable:$true] %s117
      %120 = dma.vmem_to_hbm [thread:$0]  %s118, 16, %s2, [#allocation4]
    $region25: #{tpu_custom_call.1} parent=1 // pred_fallthru
      _
    // Predicated region
    $region26: #{tpu_custom_call.1} parent=1 // pred_check
      _
    $region27: #{tpu_custom_call.1} parent=1 // pred_check_branch
      %122 = sbr.rel (0) target = $region29
    $region28: #{tpu_custom_call.1} parent=1 // pred_region
      %123 = dma.done [#allocation4], 16
    $region29: #{tpu_custom_call.1} parent=1 // pred_fallthru
      _
    %124 = vsyncpa [#allocation3], 1
    %125 = vsyncpa [#allocation4], 1
    %126 = vsyncpa [#allocation5], 1

</llo_original>
